<compile_context>
chip_gen: v5e
topology: v5e:2x2
jax: 0.10.0
libtpu: 0.0.40
codegen_flags: <defaults>
</compile_context>

<pallas_src>
import functools

import jax
import jax.numpy as jnp
from jax.experimental import pallas as pl
from jax.experimental.pallas import tpu as pltpu


# ----------------------------------- kernels -----------------------------------------

def _mlp_kernel(emb_ref, w1g_ref, b1g_ref, w2g_ref, b2g_ref,
                w1b_ref, b1b_ref, w2b_ref, b2b_ref, dg_ref, db_ref):
    """fc_gamma / fc_beta: Linear -> ReLU -> Linear (tiny, single grid step)."""
    emb = emb_ref[...]
    hg = jnp.maximum(
        jnp.dot(emb, w1g_ref[...], preferred_element_type=jnp.float32) + b1g_ref[...], 0.0)
    dg_ref[...] = (jnp.dot(hg, w2g_ref[...], preferred_element_type=jnp.float32)
                   + b2g_ref[...]).astype(dg_ref.dtype)
    hb = jnp.maximum(
        jnp.dot(emb, w1b_ref[...], preferred_element_type=jnp.float32) + b1b_ref[...], 0.0)
    db_ref[...] = (jnp.dot(hb, w2b_ref[...], preferred_element_type=jnp.float32)
                   + b2b_ref[...]).astype(db_ref.dtype)


def _stats_kernel(n_groups, x_ref, psum_ref, psq_ref):
    """Accumulate per-row-chunk partial sum / sum-of-squares.

    psum/psq output blocks are (8, lane_tile), resident across the width axis
    (constant block index), so the hot loop is only elementwise VPU adds -- the final
    collapse to scalars happens in the wrapper.
    """
    @pl.when(pl.program_id(1) == 0)
    def _():
        psum_ref[...] = jnp.zeros_like(psum_ref)
        psq_ref[...] = jnp.zeros_like(psq_ref)

    x = x_ref[...].astype(jnp.float32)           # (row_tile, lane_tile)
    acc_s = psum_ref[...]
    acc_q = psq_ref[...]
    # Fold the row dimension in sublane-aligned groups of 8 (static, tile-aligned
    # slices -> pure vreg adds, no cross-lane movement).
    for g in range(n_groups):
        xg = x[g * 8:(g + 1) * 8, :]
        acc_s = acc_s + xg
        acc_q = acc_q + xg * xg
    psum_ref[...] = acc_s
    psq_ref[...] = acc_q


def _apply_kernel(scale_ref, shift_ref, x_ref, o_ref):
    """out = x * scale + shift ; per-row (b,c) scale/shift broadcast over lanes."""
    o_ref[...] = (x_ref[...] * scale_ref[...] + shift_ref[...]).astype(o_ref.dtype)


# ----------------------------------- tiling ------------------------------------------

def _round_up(x, m):
    return ((x + m - 1) // m) * m


def _choose_tiles(rows, width, max_tile_bytes=2 * 1024 * 1024):
    """Pick (row_tile, lane_tile, padded_rows, padded_width).

    Lane tile: multiple of 128 dividing the 128-padded width (unmasked stores).
    Row tile: multiple of 8, sized so one f32 tile stays <= ~2 MiB (v7x VMEM-safe
    even with double-buffered input AND output)."""
    w_pad = _round_up(width, 128)
    lane_tile = 128
    for cand in (2048, 1024, 512, 256, 128):
        if w_pad % cand == 0:
            lane_tile = cand
            break

    r8 = _round_up(rows, 8)
    budget_rows = (max_tile_bytes // 4) // lane_tile
    row_tile = max(8, min(512, (budget_rows // 8) * 8))
    if row_tile >= r8:
        row_tile = r8
        r_pad = r8
    else:
        r_pad = _round_up(r8, row_tile)
    return row_tile, lane_tile, r_pad, w_pad


def _pad2d(x, r_pad, w_pad):
    r, w = x.shape
    if r == r_pad and w == w_pad:
        return x
    return jnp.pad(x, ((0, r_pad - r), (0, w_pad - w)))


# --------------------------------- pallas calls ---------------------------------------

def _run_mlp(lstm_emb, p):
    B, L = lstm_emb.shape
    E = p["w1_g"].shape[0]
    C = p["w2_g"].shape[0]
    full = lambda shape: pl.BlockSpec(shape, lambda i: (0, 0))
    return pl.pallas_call(
        _mlp_kernel,
        out_shape=(jax.ShapeDtypeStruct((B, C), jnp.float32),
                   jax.ShapeDtypeStruct((B, C), jnp.float32)),
        grid_spec=pltpu.PrefetchScalarGridSpec(
            num_scalar_prefetch=0,
            grid=(1,),
            in_specs=[full((B, L)),
                      full((L, E)), full((1, E)), full((E, C)), full((1, C)),
                      full((L, E)), full((1, E)), full((E, C)), full((1, C))],
            out_specs=[full((B, C)), full((B, C))],
        ),
        compiler_params=pltpu.CompilerParams(dimension_semantics=("arbitrary",)),
    )(lstm_emb,
      p["w1_g"].T, p["b1_g"].reshape(1, E), p["w2_g"].T, p["b2_g"].reshape(1, C),
      p["w1_b"].T, p["b1_b"].reshape(1, E), p["w2_b"].T, p["b2_b"].reshape(1, C))


def _run_stats(xp, row_tile, lane_tile):
    r_pad, w_pad = xp.shape
    n_r, n_w = r_pad // row_tile, w_pad // lane_tile
    psum, psq = pl.pallas_call(
        functools.partial(_stats_kernel, row_tile // 8),
        out_shape=(jax.ShapeDtypeStruct((n_r * 8, lane_tile), jnp.float32),
                   jax.ShapeDtypeStruct((n_r * 8, lane_tile), jnp.float32)),
        grid_spec=pltpu.PrefetchScalarGridSpec(
            num_scalar_prefetch=0,
            grid=(n_r, n_w),                                   # row chunks x width tiles
            in_specs=[pl.BlockSpec((row_tile, lane_tile), lambda r, w: (r, w))],
            out_specs=[pl.BlockSpec((8, lane_tile), lambda r, w: (r, 0)),
                       pl.BlockSpec((8, lane_tile), lambda r, w: (r, 0))],
        ),
        compiler_params=pltpu.CompilerParams(
            dimension_semantics=("parallel", "arbitrary")),    # rows shardable (v7x 2-TC)
        cost_estimate=pl.CostEstimate(
            flops=3 * r_pad * w_pad, transcendentals=0,
            bytes_accessed=4 * r_pad * w_pad),
    )(xp)
    # Collapse per-chunk vectorized partials to scalars (tiny; done by XLA).
    return jnp.sum(psum), jnp.sum(psq)


def _run_apply(scale, shift, xp, row_tile, lane_tile, out_dtype):
    r_pad, w_pad = xp.shape
    n_r, n_w = r_pad // row_tile, w_pad // lane_tile
    return pl.pallas_call(
        _apply_kernel,
        out_shape=jax.ShapeDtypeStruct((r_pad, w_pad), out_dtype),
        grid_spec=pltpu.PrefetchScalarGridSpec(
            num_scalar_prefetch=0,
            grid=(n_r, n_w),
            in_specs=[pl.BlockSpec((row_tile, 1), lambda r, w: (r, 0)),   # scale
                      pl.BlockSpec((row_tile, 1), lambda r, w: (r, 0)),   # shift
                      pl.BlockSpec((row_tile, lane_tile), lambda r, w: (r, w))],
            out_specs=pl.BlockSpec((row_tile, lane_tile), lambda r, w: (r, w)),
        ),
        compiler_params=pltpu.CompilerParams(
            dimension_semantics=("parallel", "parallel")),
        cost_estimate=pl.CostEstimate(
            flops=2 * r_pad * w_pad, transcendentals=0,
            bytes_accessed=4 * 2 * r_pad * w_pad),
    )(scale, shift, xp)


# ----------------------------------- wrapper ------------------------------------------

def conditional_batch_norm_pallas(feature, lstm_emb, p, eps=1e-5):
    """feature: (B, C, W) f32; lstm_emb: (B, lstm_size) f32. Returns (out, lstm_emb)."""
    B, C, W = feature.shape
    R = B * C

    # 1) tiny delta-gamma / delta-beta MLPs (single-step Pallas call, no padded weights).
    dg, db = _run_mlp(lstm_emb, p)

    # 2) lane-dense, VMEM-budgeted tiling of the (R, W) feature slab.
    row_tile, lane_tile, r_pad, w_pad = _choose_tiles(R, W)
    xp = _pad2d(feature.reshape(R, W).astype(jnp.float32), r_pad, w_pad)  # zero pad: no
    # effect on sum / sum-of-squares (true element count used below).

    # 3) global stats (pass 1).
    s_sum, s_sq = _run_stats(xp, row_tile, lane_tile)
    n = float(R * W)
    mean = s_sum / n
    var = jnp.maximum((s_sq - n * mean * mean) / (n - 1.0), 0.0)   # torch.var: unbiased
    inv_std = 1.0 / jnp.sqrt(var + eps)

    # 4) fold scalar stats + per-(b,c) gamma/beta into one per-row scale/shift.
    gam = p["gammas"] + dg
    bet = p["betas"] + db
    scale = _pad2d((gam * inv_std).reshape(R, 1), r_pad, 1)
    shift = _pad2d((bet - mean * gam * inv_std).reshape(R, 1), r_pad, 1)

    # 5) apply (pass 2): pure lane-dense FMA.
    out = _run_apply(scale, shift, xp, row_tile, lane_tile, feature.dtype)
    out = out[:R, :W].reshape(B, C, W)
    return out, lstm_emb


# ----------------------------- parameter setup + reference -----------------------------

def make_params(key, batch, channels, lstm_size, emb_size):
    ks = jax.random.split(key, 4)
    init = lambda k, shape: 0.3 * jax.random.normal(k, shape, jnp.float32)
    return dict(
        w1_g=init(ks[0], (emb_size, lstm_size)),
        b1_g=jnp.full((emb_size,), 0.1, jnp.float32),
        w2_g=init(ks[1], (channels, emb_size)),
        b2_g=jnp.full((channels,), 0.1, jnp.float32),
        w1_b=init(ks[2], (emb_size, lstm_size)),
        b1_b=jnp.full((emb_size,), 0.1, jnp.float32),
        w2_b=init(ks[3], (channels, emb_size)),
        b2_b=jnp.full((channels,), 0.1, jnp.float32),
        gammas=jnp.ones((batch, channels), jnp.float32),   # nn.Parameter(torch.ones)
        betas=jnp.zeros((batch, channels), jnp.float32),   # nn.Parameter(torch.zeros)
    )


def conditional_batch_norm_ref(feature, lstm_emb, p, eps=1e-5):
    hg = jnp.maximum(lstm_emb @ p["w1_g"].T + p["b1_g"], 0.0)
    dg = hg @ p["w2_g"].T + p["b2_g"]
    hb = jnp.maximum(lstm_emb @ p["w1_b"].T + p["b1_b"], 0.0)
    db = hb @ p["w2_b"].T + p["b2_b"]
    gam = p["gammas"] + dg
    bet = p["betas"] + db
    mean = jnp.mean(feature)
    var = jnp.var(feature, ddof=1)
    xn = (feature - mean) / jnp.sqrt(var + eps)
    return xn * gam[:, :, None] + bet[:, :, None]


if __name__ == "__main__":
    key = jax.random.PRNGKey(0)
    k_f, k_e, k_p = jax.random.split(key, 3)

    B, C, W, LSTM, EMB = 2, 4, 16, 8, 32
    feature = jax.random.normal(k_f, (B, C, W), jnp.float32)
    lstm_emb = jax.random.normal(k_e, (B, LSTM), jnp.float32)
    params = make_params(k_p, B, C, LSTM, EMB)

    out, emb_out = conditional_batch_norm_pallas(feature, lstm_emb, params)
    out = jax.block_until_ready(out)
    ref = conditional_batch_norm_ref(feature, lstm_emb, params)

    assert out.shape == (B, C, W)
    assert emb_out is lstm_emb
    err = float(jnp.max(jnp.abs(out - ref)))
    assert jnp.allclose(out, ref, atol=1e-4, rtol=1e-4), err
    print("KERNEL_OK")
</pallas_src>

<mosaic_0001>
module attributes {stable_mosaic.version = 11 : i64} {
  func.func @_mlp_kernel(%arg0: i32, %arg1: memref<2x8xf32, #tpu.memory_space<vmem>>, %arg2: memref<8x32xf32, #tpu.memory_space<vmem>>, %arg3: memref<1x32xf32, #tpu.memory_space<vmem>>, %arg4: memref<32x4xf32, #tpu.memory_space<vmem>>, %arg5: memref<1x4xf32, #tpu.memory_space<vmem>>, %arg6: memref<8x32xf32, #tpu.memory_space<vmem>>, %arg7: memref<1x32xf32, #tpu.memory_space<vmem>>, %arg8: memref<32x4xf32, #tpu.memory_space<vmem>>, %arg9: memref<1x4xf32, #tpu.memory_space<vmem>>, %arg10: memref<2x4xf32, #tpu.memory_space<vmem>>, %arg11: memref<2x4xf32, #tpu.memory_space<vmem>>) attributes {dimension_semantics = [#tpu.dimension_semantics<arbitrary>], iteration_bounds = array<i64: 1>, scalar_prefetch = 0 : i64, scratch_operands = 0 : i64, tpu.core_type = #tpu.core_type<tc>, window_params = [{pipeline_mode = #tpu.pipeline_mode<synchronous>, transform_indices = @transform_0, window_bounds = array<i64: 2, 8>}, {pipeline_mode = #tpu.pipeline_mode<synchronous>, transform_indices = @transform_1, window_bounds = array<i64: 8, 32>}, {pipeline_mode = #tpu.pipeline_mode<synchronous>, transform_indices = @transform_2, window_bounds = array<i64: 1, 32>}, {pipeline_mode = #tpu.pipeline_mode<synchronous>, transform_indices = @transform_3, window_bounds = array<i64: 32, 4>}, {pipeline_mode = #tpu.pipeline_mode<synchronous>, transform_indices = @transform_4, window_bounds = array<i64: 1, 4>}, {pipeline_mode = #tpu.pipeline_mode<synchronous>, transform_indices = @transform_5, window_bounds = array<i64: 8, 32>}, {pipeline_mode = #tpu.pipeline_mode<synchronous>, transform_indices = @transform_6, window_bounds = array<i64: 1, 32>}, {pipeline_mode = #tpu.pipeline_mode<synchronous>, transform_indices = @transform_7, window_bounds = array<i64: 32, 4>}, {pipeline_mode = #tpu.pipeline_mode<synchronous>, transform_indices = @transform_8, window_bounds = array<i64: 1, 4>}, {pipeline_mode = #tpu.pipeline_mode<synchronous>, transform_indices = @transform_9, window_bounds = array<i64: 2, 4>}, {pipeline_mode = #tpu.pipeline_mode<synchronous>, transform_indices = @transform_10, window_bounds = array<i64: 2, 4>}]} {
    %c0 = arith.constant 0 : index
    %c0_0 = arith.constant 0 : index
    %0 = vector.load %arg1[%c0, %c0_0] : memref<2x8xf32, #tpu.memory_space<vmem>>, vector<2x8xf32>
    %c0_1 = arith.constant 0 : index
    %c0_2 = arith.constant 0 : index
    %1 = vector.load %arg2[%c0_1, %c0_2] : memref<8x32xf32, #tpu.memory_space<vmem>>, vector<8x32xf32>
    %cst = arith.constant dense<0.000000e+00> : vector<2x32xf32>
    %2 = tpu.matmul %0, %1, %cst {dimension_numbers = #tpu.dot_dimension_numbers<[1], [0], [0], [1], [0, 0, 1, 1], [], []>} : vector<2x8xf32>, vector<8x32xf32>, vector<2x32xf32> -> vector<2x32xf32>
    %c0_3 = arith.constant 0 : index
    %c0_4 = arith.constant 0 : index
    %3 = vector.load %arg3[%c0_3, %c0_4] : memref<1x32xf32, #tpu.memory_space<vmem>>, vector<1x32xf32>
    %4 = vector.broadcast %3 : vector<1x32xf32> to vector<2x32xf32>
    %5 = arith.addf %2, %4 : vector<2x32xf32>
    %cst_5 = arith.constant 0.000000e+00 : f32
    %6 = vector.broadcast %cst_5 : f32 to vector<2x32xf32>
    %7 = arith.maximumf %5, %6 : vector<2x32xf32>
    %c0_6 = arith.constant 0 : index
    %c0_7 = arith.constant 0 : index
    %8 = vector.load %arg4[%c0_6, %c0_7] : memref<32x4xf32, #tpu.memory_space<vmem>>, vector<32x4xf32>
    %cst_8 = arith.constant dense<0.000000e+00> : vector<2x4xf32>
    %9 = tpu.matmul %7, %8, %cst_8 {dimension_numbers = #tpu.dot_dimension_numbers<[1], [0], [0], [1], [0, 0, 1, 1], [], []>} : vector<2x32xf32>, vector<32x4xf32>, vector<2x4xf32> -> vector<2x4xf32>
    %c0_9 = arith.constant 0 : index
    %c0_10 = arith.constant 0 : index
    %10 = vector.load %arg5[%c0_9, %c0_10] : memref<1x4xf32, #tpu.memory_space<vmem>>, vector<1x4xf32>
    %11 = vector.broadcast %10 : vector<1x4xf32> to vector<2x4xf32>
    %12 = arith.addf %9, %11 : vector<2x4xf32>
    %c0_11 = arith.constant 0 : index
    %c0_12 = arith.constant 0 : index
    %13 = vector.load %arg10[%c0_11, %c0_12] : memref<2x4xf32, #tpu.memory_space<vmem>>, vector<2x4xf32>
    tpu.vector_store %arg10[%c0_11, %c0_12], %12 {strides = array<i32>} : memref<2x4xf32, #tpu.memory_space<vmem>>, vector<2x4xf32>,
    %c0_13 = arith.constant 0 : index
    %c0_14 = arith.constant 0 : index
    %14 = vector.load %arg6[%c0_13, %c0_14] : memref<8x32xf32, #tpu.memory_space<vmem>>, vector<8x32xf32>
    %cst_15 = arith.constant dense<0.000000e+00> : vector<2x32xf32>
    %15 = tpu.matmul %0, %14, %cst_15 {dimension_numbers = #tpu.dot_dimension_numbers<[1], [0], [0], [1], [0, 0, 1, 1], [], []>} : vector<2x8xf32>, vector<8x32xf32>, vector<2x32xf32> -> vector<2x32xf32>
    %c0_16 = arith.constant 0 : index
    %c0_17 = arith.constant 0 : index
    %16 = vector.load %arg7[%c0_16, %c0_17] : memref<1x32xf32, #tpu.memory_space<vmem>>, vector<1x32xf32>
    %17 = vector.broadcast %16 : vector<1x32xf32> to vector<2x32xf32>
    %18 = arith.addf %15, %17 : vector<2x32xf32>
    %cst_18 = arith.constant 0.000000e+00 : f32
    %19 = vector.broadcast %cst_18 : f32 to vector<2x32xf32>
    %20 = arith.maximumf %18, %19 : vector<2x32xf32>
    %c0_19 = arith.constant 0 : index
    %c0_20 = arith.constant 0 : index
    %21 = vector.load %arg8[%c0_19, %c0_20] : memref<32x4xf32, #tpu.memory_space<vmem>>, vector<32x4xf32>
    %cst_21 = arith.constant dense<0.000000e+00> : vector<2x4xf32>
    %22 = tpu.matmul %20, %21, %cst_21 {dimension_numbers = #tpu.dot_dimension_numbers<[1], [0], [0], [1], [0, 0, 1, 1], [], []>} : vector<2x32xf32>, vector<32x4xf32>, vector<2x4xf32> -> vector<2x4xf32>
    %c0_22 = arith.constant 0 : index
    %c0_23 = arith.constant 0 : index
    %23 = vector.load %arg9[%c0_22, %c0_23] : memref<1x4xf32, #tpu.memory_space<vmem>>, vector<1x4xf32>
    %24 = vector.broadcast %23 : vector<1x4xf32> to vector<2x4xf32>
    %25 = arith.addf %22, %24 : vector<2x4xf32>
    %c0_24 = arith.constant 0 : index
    %c0_25 = arith.constant 0 : index
    %26 = vector.load %arg11[%c0_24, %c0_25] : memref<2x4xf32, #tpu.memory_space<vmem>>, vector<2x4xf32>
    tpu.vector_store %arg11[%c0_24, %c0_25], %25 {strides = array<i32>} : memref<2x4xf32, #tpu.memory_space<vmem>>, vector<2x4xf32>,
    return
  }
  func.func @transform_0(%arg0: i32) -> (i32, i32) {
    %c0_i32 = arith.constant 0 : i32
    %c0_i32_0 = arith.constant 0 : i32
    %c0_i32_1 = arith.constant 0 : i32
    return %c0_i32, %c0_i32_0 : i32, i32
  }
  func.func @transform_1(%arg0: i32) -> (i32, i32) {
    %c0_i32 = arith.constant 0 : i32
    %c0_i32_0 = arith.constant 0 : i32
    %c0_i32_1 = arith.constant 0 : i32
    return %c0_i32, %c0_i32_0 : i32, i32
  }
  func.func @transform_2(%arg0: i32) -> (i32, i32) {
    %c0_i32 = arith.constant 0 : i32
    %c0_i32_0 = arith.constant 0 : i32
    %c0_i32_1 = arith.constant 0 : i32
    return %c0_i32, %c0_i32_0 : i32, i32
  }
  func.func @transform_3(%arg0: i32) -> (i32, i32) {
    %c0_i32 = arith.constant 0 : i32
    %c0_i32_0 = arith.constant 0 : i32
    %c0_i32_1 = arith.constant 0 : i32
    return %c0_i32, %c0_i32_0 : i32, i32
  }
  func.func @transform_4(%arg0: i32) -> (i32, i32) {
    %c0_i32 = arith.constant 0 : i32
    %c0_i32_0 = arith.constant 0 : i32
    %c0_i32_1 = arith.constant 0 : i32
    return %c0_i32, %c0_i32_0 : i32, i32
  }
  func.func @transform_5(%arg0: i32) -> (i32, i32) {
    %c0_i32 = arith.constant 0 : i32
    %c0_i32_0 = arith.constant 0 : i32
    %c0_i32_1 = arith.constant 0 : i32
    return %c0_i32, %c0_i32_0 : i32, i32
  }
  func.func @transform_6(%arg0: i32) -> (i32, i32) {
    %c0_i32 = arith.constant 0 : i32
    %c0_i32_0 = arith.constant 0 : i32
    %c0_i32_1 = arith.constant 0 : i32
    return %c0_i32, %c0_i32_0 : i32, i32
  }
  func.func @transform_7(%arg0: i32) -> (i32, i32) {
    %c0_i32 = arith.constant 0 : i32
    %c0_i32_0 = arith.constant 0 : i32
    %c0_i32_1 = arith.constant 0 : i32
    return %c0_i32, %c0_i32_0 : i32, i32
  }
  func.func @transform_8(%arg0: i32) -> (i32, i32) {
    %c0_i32 = arith.constant 0 : i32
    %c0_i32_0 = arith.constant 0 : i32
    %c0_i32_1 = arith.constant 0 : i32
    return %c0_i32, %c0_i32_0 : i32, i32
  }
  func.func @transform_9(%arg0: i32) -> (i32, i32) {
    %c0_i32 = arith.constant 0 : i32
    %c0_i32_0 = arith.constant 0 : i32
    %c0_i32_1 = arith.constant 0 : i32
    return %c0_i32, %c0_i32_0 : i32, i32
  }
  func.func @transform_10(%arg0: i32) -> (i32, i32) {
    %c0_i32 = arith.constant 0 : i32
    %c0_i32_0 = arith.constant 0 : i32
    %c0_i32_1 = arith.constant 0 : i32
    return %c0_i32, %c0_i32_0 : i32, i32
  }
}

</mosaic_0001>

<llo_original>
// kernel: tpu_custom_call.1
$region0: #{tpu_custom_call.1}
  #allocation0 [shape = 'u32[]', space=smem, size = 0x4, offset = 0x4, fixed_abs, tag = 'smem constant byte address 0x4 - core index']
  #allocation1 [shape = 'u32[72,128]{1,0:T(1,128)}', space=vmem, size = 0x9000, scoped, tag = 'internal scratch']
  %s0 = inlined_call_operand.vmem [shape: f32[2,8], index: 0, kind: input, shape index: {}]
  %s1 = inlined_call_operand.vmem [shape: f32[8,32], index: 1, kind: input, shape index: {}]
  %s2 = inlined_call_operand.vmem [shape: f32[1,32], index: 2, kind: input, shape index: {}]
  %s3 = inlined_call_operand.vmem [shape: f32[32,4], index: 3, kind: input, shape index: {}]
  %s4 = inlined_call_operand.vmem [shape: f32[1,4], index: 4, kind: input, shape index: {}]
  %s5 = inlined_call_operand.vmem [shape: f32[8,32], index: 5, kind: input, shape index: {}]
  %s6 = inlined_call_operand.vmem [shape: f32[1,32], index: 6, kind: input, shape index: {}]
  %s7 = inlined_call_operand.vmem [shape: f32[32,4], index: 7, kind: input, shape index: {}]
  %s8 = inlined_call_operand.vmem [shape: f32[1,4], index: 8, kind: input, shape index: {}]
  %s9 = inlined_call_operand.hbm [shape: f32[2,4], index: 9, kind: output, shape index: {0}]
  %s10 = inlined_call_operand.hbm [shape: f32[2,4], index: 10, kind: output, shape index: {1}]
  %11 = xla_tuple %s9, %s10
  %s12 = sld [smem:[#allocation0]]
  $region54: #{tpu_custom_call.1} parent=0
    _
  %s14 = ssub.s32 1, %s12
  %s15 = scalar_select 0, %s14, %s12
  $region1: #{tpu_custom_call.1} parent=0
    #allocation2 [shape = 'u8[1024]{0}', space=vmem, size = 0x400, scoped, tag = 'output window, operand 0, single buffered']
    #allocation3 [shape = 's32[1]{0}', space=sflag, size = 0x4, scoped, tag = 'scoped memory for tpu_custom_call.1']
    #allocation4 [shape = 'u8[1024]{0}', space=vmem, size = 0x400, scoped, tag = 'output window, operand 1, single buffered']
    #allocation5 [shape = 's32[1]{0}', space=sflag, size = 0x4, scoped, tag = 'scoped memory for tpu_custom_call.1']
    %16 = vsyncpa [#allocation3], 0
    %17 = vsyncpa [#allocation5], 0
    // Predicated region
    $region2: #{tpu_custom_call.1} parent=1 // pred_check
      _
    $region3: #{tpu_custom_call.1} parent=1 // pred_check_branch
      %19 = sbr.rel (0) target = $region5
    $region4: #{tpu_custom_call.1} parent=1 // pred_region
      _
    $region5: #{tpu_custom_call.1} parent=1 // pred_fallthru
      _
    // Predicated region
    $region6: #{tpu_custom_call.1} parent=1 // pred_check
      _
    $region7: #{tpu_custom_call.1} parent=1 // pred_check_branch
      %21 = sbr.rel (0) target = $region9
    $region8: #{tpu_custom_call.1} parent=1 // pred_region
      _
    $region9: #{tpu_custom_call.1} parent=1 // pred_fallthru
      _
    // Predicated region
    $region10: #{tpu_custom_call.1} parent=1 // pred_check
      _
    $region11: #{tpu_custom_call.1} parent=1 // pred_check_branch
      %23 = sbr.rel (0) target = $region13
    $region12: #{tpu_custom_call.1} parent=1 // pred_region
      _
    $region13: #{tpu_custom_call.1} parent=1 // pred_fallthru
      _
    // Predicated region
    $region14: #{tpu_custom_call.1} parent=1 // pred_check
      _
    $region15: #{tpu_custom_call.1} parent=1 // pred_check_branch
      %25 = sbr.rel (0) target = $region17
    $region16: #{tpu_custom_call.1} parent=1 // pred_region
      _
    $region17: #{tpu_custom_call.1} parent=1 // pred_fallthru
      _
    // Predicated region
    $region18: #{tpu_custom_call.1} parent=1 // pred_check
      _
    $region19: #{tpu_custom_call.1} parent=1 // pred_check_branch
      %27 = sbr.rel (0) target = $region21
    $region20: #{tpu_custom_call.1} parent=1 // pred_region
      _
    $region21: #{tpu_custom_call.1} parent=1 // pred_fallthru
      _
    // Predicated region
    $region22: #{tpu_custom_call.1} parent=1 // pred_check
      _
    $region23: #{tpu_custom_call.1} parent=1 // pred_check_branch
      %29 = sbr.rel (0) target = $region25
    $region24: #{tpu_custom_call.1} parent=1 // pred_region
      _
    $region25: #{tpu_custom_call.1} parent=1 // pred_fallthru
      _
    // Predicated region
    $region26: #{tpu_custom_call.1} parent=1 // pred_check
      _
    $region27: #{tpu_custom_call.1} parent=1 // pred_check_branch
      %31 = sbr.rel (0) target = $region29
    $region28: #{tpu_custom_call.1} parent=1 // pred_region
      _
    $region29: #{tpu_custom_call.1} parent=1 // pred_fallthru
      _
    // Predicated region
    $region30: #{tpu_custom_call.1} parent=1 // pred_check
      _
    $region31: #{tpu_custom_call.1} parent=1 // pred_check_branch
      %33 = sbr.rel (0) target = $region33
    $region32: #{tpu_custom_call.1} parent=1 // pred_region
      _
    $region33: #{tpu_custom_call.1} parent=1 // pred_fallthru
      _
    // Predicated region
    $region34: #{tpu_custom_call.1} parent=1 // pred_check
      _
    $region35: #{tpu_custom_call.1} parent=1 // pred_check_branch
      %35 = sbr.rel (0) target = $region37
    $region36: #{tpu_custom_call.1} parent=1 // pred_region
      _
    $region37: #{tpu_custom_call.1} parent=1 // pred_fallthru
      _
    %v36 = vld [vmem:[%s0] sm:$0x3]
    %v37 = vld [vmem:[%s1] sm:$0xff]
    %v38 = vld [vmem:[%s2] sm:$0x1]
    %v40 = vperm.slane %v38, 0
    %vm42 = vcmask 64512
    %v44 = vsel %vm42, %v36, 0
    %46 = vmatpush.msra.mxu0 0.0
    %47 = vmatpush.msra.mxu0 0.0
    %48 = vmatpush.msra.mxu0 0.0
    %49 = vmatpush.msra.mxu0 0.0
    %50 = vmatpush.msra.mxu0 0.0
    %51 = vmatpush.msra.mxu0 0.0
    %52 = vmatpush.msra.mxu0 0.0
    %53 = vmatpush.msra.mxu0 0.0
    %54 = vmatpush.msra.mxu0 0.0
    %55 = vmatpush.msra.mxu0 0.0
    %56 = vmatpush.msra.mxu0 0.0
    %57 = vmatpush.msra.mxu0 0.0
    %58 = vmatpush.msra.mxu0 0.0
    %59 = vmatpush.msra.mxu0 0.0
    %60 = vmatpush.msra.mxu0 0.0
    %61 = vmatpush.msra.mxu0 %v37
    %62 = vmatmul.f32.gmra.mxu0 %v44
    %v63 = vpop.f32.mrf.mxu0
    %v64 = vadd.f32 %v40, %v63
    %65 = vdwg.mxu0
    %v66 = vmax.f32 %v64, 0.0
    %v67 = vld [vmem:[%s3] sm:$0xff]
    %v68 = vld [vmem:[%s3 + $0x8] sm:$0xff]
    %v69 = vld [vmem:[%s3 + $0x10] sm:$0xff]
    %v70 = vld [vmem:[%s3 + $0x18] sm:$0xff]
    %v71 = vld [vmem:[%s4] sm:$0x1]
    %v73 = vperm.slane %v71, 0
    %vm75 = vcmask 261120
    %v77 = vsel %vm75, %v66, 0
    %79 = vmatpush.msra.mxu0 0.0
    %80 = vmatpush.msra.mxu0 0.0
    %81 = vmatpush.msra.mxu0 0.0
    %82 = vmatpush.msra.mxu0 0.0
    %83 = vmatpush.msra.mxu0 0.0
    %84 = vmatpush.msra.mxu0 0.0
    %85 = vmatpush.msra.mxu0 0.0
    %86 = vmatpush.msra.mxu0 0.0
    %87 = vmatpush.msra.mxu0 0.0
    %88 = vmatpush.msra.mxu0 0.0
    %89 = vmatpush.msra.mxu0 0.0
    %90 = vmatpush.msra.mxu0 0.0
    %91 = vmatpush.msra.mxu0 %v70
    %92 = vmatpush.msra.mxu0 %v69
    %93 = vmatpush.msra.mxu0 %v68
    %94 = vmatpush.msra.mxu0 %v67
    %95 = vmatmul.f32.gmra.mxu0 %v77
    %v96 = vpop.f32.mrf.mxu0
    %v97 = vadd.f32 %v73, %v96
    %98 = vdwg.mxu0
    %vm99 = vcmask 25600
    %100 = vst.msk [vmem:[#allocation2] sm:$0x3] %vm99, %v97
    %v101 = vld [vmem:[%s5] sm:$0xff]
    %v102 = vld [vmem:[%s6] sm:$0x1]
    %v104 = vperm.slane %v102, 0
    %106 = vmatpush.msra.mxu0 0.0
    %107 = vmatpush.msra.mxu0 0.0
    %108 = vmatpush.msra.mxu0 0.0
    %109 = vmatpush.msra.mxu0 0.0
    %110 = vmatpush.msra.mxu0 0.0
    %111 = vmatpush.msra.mxu0 0.0
    %112 = vmatpush.msra.mxu0 0.0
    %113 = vmatpush.msra.mxu0 0.0
    %114 = vmatpush.msra.mxu0 0.0
    %115 = vmatpush.msra.mxu0 0.0
    %116 = vmatpush.msra.mxu0 0.0
    %117 = vmatpush.msra.mxu0 0.0
    %118 = vmatpush.msra.mxu0 0.0
    %119 = vmatpush.msra.mxu0 0.0
    %120 = vmatpush.msra.mxu0 0.0
    %121 = vmatpush.msra.mxu0 %v101
    %122 = vmatmul.f32.gmra.mxu0 %v44
    %v123 = vpop.f32.mrf.mxu0
    %v124 = vadd.f32 %v104, %v123
    %125 = vdwg.mxu0
    %v126 = vmax.f32 %v124, 0.0
    %v127 = vld [vmem:[%s7] sm:$0xff]
    %v128 = vld [vmem:[%s7 + $0x8] sm:$0xff]
    %v129 = vld [vmem:[%s7 + $0x10] sm:$0xff]
    %v130 = vld [vmem:[%s7 + $0x18] sm:$0xff]
    %v131 = vld [vmem:[%s8] sm:$0x1]
    %v133 = vperm.slane %v131, 0
    %v136 = vsel %vm75, %v126, 0
    %138 = vmatpush.msra.mxu0 0.0
    %139 = vmatpush.msra.mxu0 0.0
    %140 = vmatpush.msra.mxu0 0.0
    %141 = vmatpush.msra.mxu0 0.0
    %142 = vmatpush.msra.mxu0 0.0
    %143 = vmatpush.msra.mxu0 0.0
    %144 = vmatpush.msra.mxu0 0.0
    %145 = vmatpush.msra.mxu0 0.0
    %146 = vmatpush.msra.mxu0 0.0
    %147 = vmatpush.msra.mxu0 0.0
    %148 = vmatpush.msra.mxu0 0.0
    %149 = vmatpush.msra.mxu0 0.0
    %150 = vmatpush.msra.mxu0 %v130
    %151 = vmatpush.msra.mxu0 %v129
    %152 = vmatpush.msra.mxu0 %v128
    %153 = vmatpush.msra.mxu0 %v127
    %154 = vmatmul.f32.gmra.mxu0 %v136
    %v155 = vpop.f32.mrf.mxu0
    %v156 = vadd.f32 %v133, %v155
    %157 = vdwg.mxu0
    %158 = vst.msk [vmem:[#allocation4] sm:$0x3] %vm99, %v156
    // Predicated region
    $region38: #{tpu_custom_call.1} parent=1 // pred_check
      _
    $region39: #{tpu_custom_call.1} parent=1 // pred_check_branch
      %160 = sbr.rel (0) target = $region41
    $region40: #{tpu_custom_call.1} parent=1 // pred_region
      %162 = vsyncadd [#allocation3], 0
      %s164 = sshll.u32 [#allocation2], 4
      %s165 = int_to_ptr.vmem [resolvable:$true] %s164
      %s166 = sshll.u32 %s9, 4
      %s167 = int_to_ptr.hbm [resolvable:$true] %s166
      %169 = dma.vmem_to_hbm [thread:$0]  %s165, 32, %s167, [#allocation3]
    $region41: #{tpu_custom_call.1} parent=1 // pred_fallthru
      _
    // Predicated region
    $region42: #{tpu_custom_call.1} parent=1 // pred_check
      _
    $region43: #{tpu_custom_call.1} parent=1 // pred_check_branch
      %171 = sbr.rel (0) target = $region45
    $region44: #{tpu_custom_call.1} parent=1 // pred_region
      %173 = vsyncadd [#allocation5], 0
      %s175 = sshll.u32 [#allocation4], 4
      %s176 = int_to_ptr.vmem [resolvable:$true] %s175
      %s177 = sshll.u32 %s10, 4
      %s178 = int_to_ptr.hbm [resolvable:$true] %s177
      %180 = dma.vmem_to_hbm [thread:$0]  %s176, 32, %s178, [#allocation5]
    $region45: #{tpu_custom_call.1} parent=1 // pred_fallthru
      _
    // Predicated region
    $region46: #{tpu_custom_call.1} parent=1 // pred_check
      _
    $region47: #{tpu_custom_call.1} parent=1 // pred_check_branch
      %182 = sbr.rel (0) target = $region49
    $region48: #{tpu_custom_call.1} parent=1 // pred_region
      %184 = dma.done [#allocation3], 32
    $region49: #{tpu_custom_call.1} parent=1 // pred_fallthru
      _
    // Predicated region
    $region50: #{tpu_custom_call.1} parent=1 // pred_check
      _
    $region51: #{tpu_custom_call.1} parent=1 // pred_check_branch
      %186 = sbr.rel (0) target = $region53
    $region52: #{tpu_custom_call.1} parent=1 // pred_region
      %188 = dma.done [#allocation5], 32
    $region53: #{tpu_custom_call.1} parent=1 // pred_fallthru
      _
    %189 = vsyncpa [#allocation3], 1
    %190 = vsyncpa [#allocation5], 1

</llo_original>
